<compile_context>
chip_gen: v6e
topology: v6e:2x2x1
jax: 0.10.0
libtpu: 0.0.40
codegen_flags: <defaults>
</compile_context>

<pallas_src>
import functools

import jax
import jax.numpy as jnp
from jax.experimental import pallas as pl
from jax.experimental.pallas import tpu as pltpu


def _mase_kernel(insample_ref, forecast_ref, target_ref, mask_ref, out_ref,
                 *, freq, t_in, t_out, tb, true_b):
    # Single VMEM read per tile; up-cast to f32 AFTER the (possibly narrow-
    # dtype) load so HBM/DMA traffic stays in the storage dtype.
    x = insample_ref[...].astype(jnp.float32)      # (tb, T_i)
    fc = forecast_ref[...].astype(jnp.float32)     # (tb, T_o)
    tg = target_ref[...].astype(jnp.float32)       # (tb, T_o)
    mk = mask_ref[...].astype(jnp.float32)         # (tb, T_o)

    # Seasonal-naive scale: mean(|x[:, freq:] - x[:, :-freq]|) per row, formed
    # from the single in-register copy of x (static slices; the lane shift is
    # XLU work, idle in this mem-bound kernel).
    lead = x[:, freq:]                             # (tb, T_i - freq)
    lag = x[:, : t_in - freq]                      # (tb, T_i - freq)
    masep = jnp.mean(jnp.abs(lead - lag), axis=1, keepdims=True)   # (tb, 1)

    # divide_no_nan(mask, masep): per-row guard (masep >= 0 always), one
    # reciprocal per row, broadcast multiply — no per-element isnan/isinf pass.
    inv = jnp.where(masep > 0.0, pl.reciprocal(masep, approx=False), 0.0)
    r = mk * inv                                   # (tb, T_o)

    err = jnp.abs(tg - fc)                         # (tb, T_o)

    # Rows past the true batch (tail tile / oversized edge block) are removed
    # with a select so garbage values can never propagate.
    row = pl.program_id(0) * tb + jax.lax.broadcasted_iota(
        jnp.int32, (tb, t_out), 0)
    contrib = jnp.where(row < true_b, err * r, 0.0)
    partial = jnp.sum(contrib)                     # rank-0 f32

    # Lane/sublane-aligned per-tile partial sum: each grid step owns its own
    # (1, 8, 128) output block -> batch axis is "parallel"-safe and the store
    # is a full unmasked vst.
    out_ref[...] = jnp.broadcast_to(partial, out_ref.shape).astype(jnp.float32)


def _sublane_align(*dtypes):
    """Sublane multiple required by the narrowest input dtype (8/16/32)."""
    return max(max(8, 32 // jnp.dtype(d).itemsize) for d in dtypes)


def _choose_batch_tile(b, t_in, t_out, itemsizes, align, budget_bytes=24 << 20):
    """Largest batch tile whose double-buffered input blocks fit ~24 MiB
    (75% of the declared 32 MiB vmem limit; safe on v5e/v6e/v7x), capped so
    the grid has >= 2 tiles whenever the batch allows it."""
    if b <= align:
        return int(b)                       # full-dim block, no oversizing
    in_sz, f_sz, t_sz, m_sz = itemsizes
    per_row = 2 * (in_sz * t_in + (f_sz + t_sz + m_sz) * t_out)   # 2 buffers
    tb = budget_bytes // max(per_row, 1)
    tb = max(align, (tb // align) * align)

    b_up = -(-b // align) * align           # batch rounded up to alignment
    tb = min(tb, b_up)                      # never bigger than the batch needs
    if b_up >= 2 * align:                   # guarantee >= 2 grid tiles (v7x 2 TCs)
        half = (((b + 1) // 2) + align - 1) // align * align
        tb = min(tb, half)
    return int(max(tb, align))


def mase_loss_pallas(insample, freq, forecast, target, mask, *, batch_tile=None):
    """MASE loss, matching the PyTorch `mase_loss` module.

    insample: (B, T_i); freq: static python int; forecast/target/mask: (B, T_o).
    Inputs may be f32 / bf16 / f16; math is done in f32; returns a f32 scalar.
    """
    insample = jnp.asarray(insample)
    forecast = jnp.asarray(forecast)
    target = jnp.asarray(target)
    mask = jnp.asarray(mask)

    B, Ti = insample.shape
    Bo, To = forecast.shape
    assert Bo == B and target.shape == (B, To) and mask.shape == (B, To)
    freq = int(freq)
    assert 0 < freq < Ti

    align = _sublane_align(insample.dtype, forecast.dtype, target.dtype, mask.dtype)
    itemsizes = tuple(jnp.dtype(a.dtype).itemsize
                      for a in (insample, forecast, target, mask))
    if batch_tile is None:
        tb = _choose_batch_tile(B, Ti, To, itemsizes, align)
    else:
        tb = int(batch_tile)
    assert tb > 0 and (tb == B or tb % align == 0), (tb, align, B)

    g = -(-B // tb)                         # cdiv; no padding — tail masked in-kernel

    kernel = functools.partial(_mase_kernel, freq=freq, t_in=Ti, t_out=To,
                               tb=tb, true_b=B)

    partials = pl.pallas_call(
        kernel,
        out_shape=jax.ShapeDtypeStruct((g, 8, 128), jnp.float32),
        grid=(g,),
        in_specs=[
            pl.BlockSpec((tb, Ti), lambda i: (i, 0)),
            pl.BlockSpec((tb, To), lambda i: (i, 0)),
            pl.BlockSpec((tb, To), lambda i: (i, 0)),
            pl.BlockSpec((tb, To), lambda i: (i, 0)),
        ],
        out_specs=pl.BlockSpec((1, 8, 128), lambda i: (i, 0, 0)),
        compiler_params=pltpu.CompilerParams(
            dimension_semantics=("parallel",),     # batch tiles are independent
            vmem_limit_bytes=32 * 1024 * 1024,     # fits v5e/v6e and v7x (64 MiB phys)
        ),
    )(insample, forecast, target, mask)

    total = jnp.sum(partials[:, 0, 0])
    return total / jnp.float32(B * To)


def mase_loss_ref(insample, freq, forecast, target, mask):
    """Pure-JAX reference (mirrors the PyTorch module, f32 math)."""
    insample = jnp.asarray(insample, jnp.float32)
    forecast = jnp.asarray(forecast, jnp.float32)
    target = jnp.asarray(target, jnp.float32)
    mask = jnp.asarray(mask, jnp.float32)
    masep = jnp.mean(jnp.abs(insample[:, freq:] - insample[:, :-freq]), axis=1)
    r = mask / masep[:, None]
    r = jnp.where(jnp.isnan(r) | (r == jnp.inf), 0.0, r)
    return jnp.mean(jnp.abs(target - forecast) * r)


if __name__ == "__main__":
    # --- test 1: small f32 shapes matching the module's toy usage -----------
    k1, k2, k3, k4 = jax.random.split(jax.random.PRNGKey(0), 4)
    B, Ti, To, freq = 2, 16, 8, 2
    insample = jax.random.normal(k1, (B, Ti), dtype=jnp.float32)
    forecast = jax.random.normal(k2, (B, To), dtype=jnp.float32)
    target = jax.random.normal(k3, (B, To), dtype=jnp.float32)
    mask = (jax.random.uniform(k4, (B, To)) > 0.3).astype(jnp.float32)

    loss = jax.block_until_ready(mase_loss_pallas(insample, freq, forecast, target, mask))
    ref = mase_loss_ref(insample, freq, forecast, target, mask)
    assert jnp.allclose(loss, ref, rtol=1e-5, atol=1e-6), (loss, ref)

    # --- test 2: multi-tile grid + unpadded tail + divide_no_nan path -------
    k5, k6, k7, k8 = jax.random.split(jax.random.PRNGKey(1), 4)
    B2, Ti2, To2, freq2 = 20, 32, 16, 3
    insample2 = jax.random.normal(k5, (B2, Ti2), dtype=jnp.float32)
    insample2 = insample2.at[0].set(0.0)          # masep == 0 -> divide_no_nan
    forecast2 = jax.random.normal(k6, (B2, To2), dtype=jnp.float32)
    target2 = jax.random.normal(k7, (B2, To2), dtype=jnp.float32)
    mask2 = (jax.random.uniform(k8, (B2, To2)) > 0.5).astype(jnp.float32)

    loss2 = jax.block_until_ready(
        mase_loss_pallas(insample2, freq2, forecast2, target2, mask2, batch_tile=8))
    ref2 = mase_loss_ref(insample2, freq2, forecast2, target2, mask2)
    assert jnp.allclose(loss2, ref2, rtol=1e-5, atol=1e-6), (loss2, ref2)

    # --- test 3: native bf16 inputs (no wrapper up-cast; f32 math in-kernel) -
    k9, k10, k11, k12 = jax.random.split(jax.random.PRNGKey(2), 4)
    B3, Ti3, To3, freq3 = 4, 32, 16, 4
    insample3 = jax.random.normal(k9, (B3, Ti3)).astype(jnp.bfloat16)
    forecast3 = jax.random.normal(k10, (B3, To3)).astype(jnp.bfloat16)
    target3 = jax.random.normal(k11, (B3, To3)).astype(jnp.bfloat16)
    mask3 = (jax.random.uniform(k12, (B3, To3)) > 0.3).astype(jnp.bfloat16)

    loss3 = jax.block_until_ready(
        mase_loss_pallas(insample3, freq3, forecast3, target3, mask3))
    ref3 = mase_loss_ref(insample3, freq3, forecast3, target3, mask3)
    assert jnp.allclose(loss3, ref3, rtol=1e-5, atol=1e-6), (loss3, ref3)

    print("KERNEL_OK")
</pallas_src>

<mosaic_0001>
module attributes {stable_mosaic.version = 11 : i64} {
  func.func @_mase_kernel(%arg0: i32, %arg1: memref<2x16xf32, #tpu.memory_space<vmem>>, %arg2: memref<2x8xf32, #tpu.memory_space<vmem>>, %arg3: memref<2x8xf32, #tpu.memory_space<vmem>>, %arg4: memref<2x8xf32, #tpu.memory_space<vmem>>, %arg5: memref<1x8x128xf32, #tpu.memory_space<vmem>>) attributes {dimension_semantics = [#tpu.dimension_semantics<parallel>], iteration_bounds = array<i64: 1>, scalar_prefetch = 0 : i64, scratch_operands = 0 : i64, tpu.core_type = #tpu.core_type<tc>, window_params = [{transform_indices = @transform_0, window_bounds = array<i64: 2, 16>}, {transform_indices = @transform_1, window_bounds = array<i64: 2, 8>}, {transform_indices = @transform_2, window_bounds = array<i64: 2, 8>}, {transform_indices = @transform_3, window_bounds = array<i64: 2, 8>}, {transform_indices = @transform_4, window_bounds = array<i64: 1, 8, 128>}]} {
    %c0 = arith.constant 0 : index
    %c0_0 = arith.constant 0 : index
    %0 = vector.load %arg1[%c0, %c0_0] : memref<2x16xf32, #tpu.memory_space<vmem>>, vector<2x16xf32>
    %c0_1 = arith.constant 0 : index
    %c0_2 = arith.constant 0 : index
    %1 = vector.load %arg2[%c0_1, %c0_2] : memref<2x8xf32, #tpu.memory_space<vmem>>, vector<2x8xf32>
    %c0_3 = arith.constant 0 : index
    %c0_4 = arith.constant 0 : index
    %2 = vector.load %arg3[%c0_3, %c0_4] : memref<2x8xf32, #tpu.memory_space<vmem>>, vector<2x8xf32>
    %c0_5 = arith.constant 0 : index
    %c0_6 = arith.constant 0 : index
    %3 = vector.load %arg4[%c0_5, %c0_6] : memref<2x8xf32, #tpu.memory_space<vmem>>, vector<2x8xf32>
    %4 = vector.extract_strided_slice %0 {offsets = [0, 2], sizes = [2, 14], strides = [1, 1]} : vector<2x16xf32> to vector<2x14xf32>
    %5 = vector.extract_strided_slice %0 {offsets = [0, 0], sizes = [2, 14], strides = [1, 1]} : vector<2x16xf32> to vector<2x14xf32>
    %6 = arith.subf %4, %5 : vector<2x14xf32>
    %7 = math.absf %6 : vector<2x14xf32>
    %cst = arith.constant dense<0.000000e+00> : vector<2xf32>
    %8 = vector.multi_reduction <add>, %7, %cst [1] : vector<2x14xf32> to vector<2xf32>
    %9 = vector.shape_cast %8 : vector<2xf32> to vector<2x1xf32>
    %cst_7 = arith.constant 1.400000e+01 : f32
    %10 = vector.broadcast %cst_7 : f32 to vector<2x1xf32>
    %11 = arith.divf %9, %10 : vector<2x1xf32>
    %cst_8 = arith.constant 0.000000e+00 : f32
    %12 = vector.broadcast %cst_8 : f32 to vector<2x1xf32>
    %13 = arith.cmpf ogt, %11, %12 : vector<2x1xf32>
    %14 = tpu.reciprocal %11 : vector<2x1xf32> -> vector<2x1xf32>
    %cst_9 = arith.constant 0.000000e+00 : f32
    %15 = vector.broadcast %cst_9 : f32 to vector<2x1xf32>
    %16 = arith.select %13, %14, %15 : vector<2x1xi1>, vector<2x1xf32>
    %17 = vector.broadcast %16 : vector<2x1xf32> to vector<2x8xf32>
    %18 = arith.mulf %3, %17 : vector<2x8xf32>
    %19 = arith.subf %2, %1 : vector<2x8xf32>
    %20 = math.absf %19 : vector<2x8xf32>
    %c2_i32 = arith.constant 2 : i32
    %21 = arith.muli %arg0, %c2_i32 : i32
    %22 = tpu.iota {dimensions = array<i32: 0>} : vector<2x8xi32>
    %23 = vector.broadcast %21 : i32 to vector<2x8xi32>
    %24 = arith.addi %23, %22 : vector<2x8xi32>
    %c2_i32_10 = arith.constant 2 : i32
    %25 = vector.broadcast %c2_i32_10 : i32 to vector<2x8xi32>
    %26 = arith.cmpi slt, %24, %25 : vector<2x8xi32>
    %27 = arith.mulf %20, %18 : vector<2x8xf32>
    %cst_11 = arith.constant 0.000000e+00 : f32
    %28 = vector.broadcast %cst_11 : f32 to vector<2x8xf32>
    %29 = arith.select %26, %27, %28 : vector<2x8xi1>, vector<2x8xf32>
    %30 = vector.shape_cast %29 : vector<2x8xf32> to vector<1x2x8xf32>
    %cst_12 = arith.constant dense<0.000000e+00> : vector<1xf32>
    %31 = vector.multi_reduction <add>, %30, %cst_12 [1, 2] : vector<1x2x8xf32> to vector<1xf32>
    %32 = vector.shape_cast %31 : vector<1xf32> to vector<1x1x1xf32>
    %33 = vector.extract %32[0, 0, 0] : f32 from vector<1x1x1xf32>
    %34 = vector.broadcast %33 : f32 to vector<1x8x128xf32>
    %c0_13 = arith.constant 0 : index
    %c0_14 = arith.constant 0 : index
    %c0_15 = arith.constant 0 : index
    %35 = vector.load %arg5[%c0_13, %c0_14, %c0_15] : memref<1x8x128xf32, #tpu.memory_space<vmem>>, vector<1x8x128xf32>
    tpu.vector_store %arg5[%c0_13, %c0_14, %c0_15], %34 {strides = array<i32>} : memref<1x8x128xf32, #tpu.memory_space<vmem>>, vector<1x8x128xf32>,
    return
  }
  func.func @transform_0(%arg0: i32) -> (i32, i32) {
    %c0_i32 = arith.constant 0 : i32
    %c0_i32_0 = arith.constant 0 : i32
    return %arg0, %c0_i32 : i32, i32
  }
  func.func @transform_1(%arg0: i32) -> (i32, i32) {
    %c0_i32 = arith.constant 0 : i32
    %c0_i32_0 = arith.constant 0 : i32
    return %arg0, %c0_i32 : i32, i32
  }
  func.func @transform_2(%arg0: i32) -> (i32, i32) {
    %c0_i32 = arith.constant 0 : i32
    %c0_i32_0 = arith.constant 0 : i32
    return %arg0, %c0_i32 : i32, i32
  }
  func.func @transform_3(%arg0: i32) -> (i32, i32) {
    %c0_i32 = arith.constant 0 : i32
    %c0_i32_0 = arith.constant 0 : i32
    return %arg0, %c0_i32 : i32, i32
  }
  func.func @transform_4(%arg0: i32) -> (i32, i32, i32) {
    %c0_i32 = arith.constant 0 : i32
    %c0_i32_0 = arith.constant 0 : i32
    %c0_i32_1 = arith.constant 0 : i32
    return %arg0, %c0_i32, %c0_i32_0 : i32, i32, i32
  }
}

</mosaic_0001>

<llo_original>
// kernel: tpu_custom_call.1
$region0: #{tpu_custom_call.1}
  #allocation0 [shape = 'u32[]', space=smem, size = 0x4, offset = 0x4, fixed_abs, tag = 'smem constant byte address 0x4 - core index']
  #allocation1 [shape = 'u32[144,128]{1,0:T(1,128)}', space=vmem, size = 0x12000, scoped, tag = 'internal scratch']
  %s0 = inlined_call_operand.hbm [shape: f32[2,16], index: 0, kind: input, shape index: {}]
  %s1 = inlined_call_operand.hbm [shape: f32[2,8], index: 1, kind: input, shape index: {}]
  %s2 = inlined_call_operand.vmem [shape: f32[2,8], index: 2, kind: input, shape index: {}]
  %s3 = inlined_call_operand.vmem [shape: f32[2,8], index: 3, kind: input, shape index: {}]
  %s4 = inlined_call_operand.hbm [shape: f32[1,8,128], index: 4, kind: output, shape index: {}]
  %s5 = sld [smem:[#allocation0]]
  $region34: #{tpu_custom_call.1} parent=0
    _
  %s7 = ssub.s32 1, %s5
  %s8 = scalar_select 0, %s7, %s5
  $region1: #{tpu_custom_call.1} parent=0
    #allocation2 [shape = 'u8[1024]{0}', space=vmem, size = 0x400, scoped, tag = 'input window, operand 0, single buffered']
    #allocation3 [shape = 's32[1]{0}', space=sflag, size = 0x4, scoped, tag = 'scoped memory for tpu_custom_call.1']
    #allocation4 [shape = 's32[1]{0}', space=sflag, size = 0x4, scoped, tag = 'scoped memory for tpu_custom_call.1']
    #allocation5 [shape = 'u8[1024]{0}', space=vmem, size = 0x400, scoped, tag = 'input window, operand 1, single buffered']
    #allocation6 [shape = 's32[1]{0}', space=sflag, size = 0x4, scoped, tag = 'scoped memory for tpu_custom_call.1']
    #allocation7 [shape = 'u8[4096]{0}', space=vmem, size = 0x1000, scoped, tag = 'output window, operand 0, single buffered']
    %9 = vsyncpa [#allocation3], 0
    %10 = vsyncpa [#allocation6], 0
    %11 = vsyncpa [#allocation4], 0
    // Predicated region
    $region2: #{tpu_custom_call.1} parent=1 // pred_check
      _
    $region3: #{tpu_custom_call.1} parent=1 // pred_check_branch
      %13 = sbr.rel (0) target = $region5
    $region4: #{tpu_custom_call.1} parent=1 // pred_region
      %s15 = ssub.s32 32, 32
      %16 = vsyncadd [#allocation3], %s15
      %s18 = sshll.u32 [#allocation2], 4
      %s19 = int_to_ptr.vmem [resolvable:$true] %s18
      %21 = dma.hbm_to_vmem [thread:$0]  %s0, 32, %s19, [#allocation3]
    $region5: #{tpu_custom_call.1} parent=1 // pred_fallthru
      _
    // Predicated region
    $region6: #{tpu_custom_call.1} parent=1 // pred_check
      _
    $region7: #{tpu_custom_call.1} parent=1 // pred_check_branch
      %23 = sbr.rel (0) target = $region9
    $region8: #{tpu_custom_call.1} parent=1 // pred_region
      %s25 = ssub.s32 32, 32
      %26 = vsyncadd [#allocation6], %s25
      %s28 = sshll.u32 [#allocation5], 4
      %s29 = int_to_ptr.vmem [resolvable:$true] %s28
      %31 = dma.hbm_to_vmem [thread:$0]  %s1, 32, %s29, [#allocation6]
    $region9: #{tpu_custom_call.1} parent=1 // pred_fallthru
      _
    // Predicated region
    $region10: #{tpu_custom_call.1} parent=1 // pred_check
      _
    $region11: #{tpu_custom_call.1} parent=1 // pred_check_branch
      %33 = sbr.rel (0) target = $region13
    $region12: #{tpu_custom_call.1} parent=1 // pred_region
      _
    $region13: #{tpu_custom_call.1} parent=1 // pred_fallthru
      _
    // Predicated region
    $region14: #{tpu_custom_call.1} parent=1 // pred_check
      _
    $region15: #{tpu_custom_call.1} parent=1 // pred_check_branch
      %35 = sbr.rel (0) target = $region17
    $region16: #{tpu_custom_call.1} parent=1 // pred_region
      _
    $region17: #{tpu_custom_call.1} parent=1 // pred_fallthru
      _
    // Predicated region
    $region18: #{tpu_custom_call.1} parent=1 // pred_check
      _
    $region19: #{tpu_custom_call.1} parent=1 // pred_check_branch
      %37 = sbr.rel (0) target = $region21
    $region20: #{tpu_custom_call.1} parent=1 // pred_region
      %38 = dma.done [#allocation3], 32
    $region21: #{tpu_custom_call.1} parent=1 // pred_fallthru
      _
    // Predicated region
    $region22: #{tpu_custom_call.1} parent=1 // pred_check
      _
    $region23: #{tpu_custom_call.1} parent=1 // pred_check_branch
      %40 = sbr.rel (0) target = $region25
    $region24: #{tpu_custom_call.1} parent=1 // pred_region
      %41 = dma.done [#allocation6], 32
    $region25: #{tpu_custom_call.1} parent=1 // pred_fallthru
      _
    %v42 = vld [vmem:[#allocation2] sm:$0x3]
    %v43 = vld [vmem:[#allocation5] sm:$0x3]
    %v44 = vld [vmem:[%s2] sm:$0x3]
    %v45 = vld [vmem:[%s3] sm:$0x3]
    %47 = vrot.lane.b32.xlu0 %v42, 2
    %v48 = vpop.permute.xlu0 %47
    %v50 = vsub.f32 %v42, %v48
    %v51 = vand.u32 2147483647, %v50
    %53 = vrot.lane.b32.xlu0 %v51, 126
    %v54 = vpop.permute.xlu0 %53
    %vm56 = vcmask 107520
    %v57 = vsel %vm56, %v54, 0.0
    %58 = vadd.xlane.f32.xlu0 %v57
    %v59 = vpop.xlane.xlu0 %58
    %v60 = vrcp.pop 14.0
    %v61 = vmul.f32 %v59, %v60
    %vm62 = vcmp.gt.f32.partialorder %v61, 0.0
    %v63 = vrcp.pop %v61
    %v64 = vsel %vm62, %v63, 0.0
    %v65 = vmul.f32 %v45, %v64
    %v66 = vsub.f32 %v44, %v43
    %v67 = vand.u32 2147483647, %v66
    %s68 = smul.u32 0, 2
    %v69 = vlaneseq
    %v70 = vshrl.u32 %v69, 7
    %v71 = vstv %s68
    %v72 = vadd.s32 %v71, %v70
    %vm73 = vcmp.lt.s32.totalorder %v72, 2
    %v74 = vmul.f32 %v67, %v65
    %v75 = vsel %vm73, %v74, 0.0
    %vm76 = vcmask 58368
    %v77 = vsel %vm76, %v75, 0.0
    %78 = vadd.xlane.f32.xlu0 %v77
    %v79 = vpop.xlane.xlu0 %78
    %v80 = vrot.slane %v79, 4
    %v81 = vadd.f32 %v79, %v80
    %v82 = vrot.slane %v81, 2
    %v83 = vadd.f32 %v81, %v82
    %v84 = vrot.slane %v83, 1
    %v85 = vadd.f32 %v83, %v84
    %s86 = vtos %v85
    %v87 = vstv %s86
    %88 = vst [vmem:[#allocation7] sm:$0xff] %v87
    // Predicated region
    $region26: #{tpu_custom_call.1} parent=1 // pred_check
      _
    $region27: #{tpu_custom_call.1} parent=1 // pred_check_branch
      %90 = sbr.rel (0) target = $region29
    $region28: #{tpu_custom_call.1} parent=1 // pred_region
      %s92 = ssub.s32 128, 128
      %93 = vsyncadd [#allocation4], %s92
      %s95 = sshll.u32 [#allocation7], 4
      %s96 = int_to_ptr.vmem [resolvable:$true] %s95
      %98 = dma.vmem_to_hbm [thread:$0]  %s96, 128, %s4, [#allocation4]
    $region29: #{tpu_custom_call.1} parent=1 // pred_fallthru
      _
    // Predicated region
    $region30: #{tpu_custom_call.1} parent=1 // pred_check
      _
    $region31: #{tpu_custom_call.1} parent=1 // pred_check_branch
      %100 = sbr.rel (0) target = $region33
    $region32: #{tpu_custom_call.1} parent=1 // pred_region
      %101 = dma.done [#allocation4], 128
    $region33: #{tpu_custom_call.1} parent=1 // pred_fallthru
      _
    %102 = vsyncpa [#allocation3], 1
    %103 = vsyncpa [#allocation6], 1
    %104 = vsyncpa [#allocation4], 1

</llo_original>
